<compile_context>
chip_gen: v6e
topology: v6e:2x2x1
jax: 0.10.0
libtpu: 0.0.40
codegen_flags: <defaults>
</compile_context>

<pallas_src>
import jax
import jax.numpy as jnp
from jax.experimental import pallas as pl
from jax.experimental.pallas import tpu as pltpu

_LANE = 128                      # vreg lane width
_TILE_BYTES = 2 * 1024 * 1024    # per-buffer tile target (~85% HBM roofline plateau)
_BYPASS_BYTES = 128 * 1024       # below this, pallas_call overhead dominates


def _residual_kernel(y_ref, x_ref, o_ref):
    # Pure VPU elementwise add on the current (TR, 128) tile, native dtype.
    o_ref[...] = y_ref[...] + x_ref[...]


def _pick_tile_rows(rows, itemsize):
    """Byte-targeted tile rows, rounded to the dtype's sublane packing, and
    capped at ceil(rows/2) so the grid always has >= 2 steps (v7x megacore)."""
    sub = max(8, 32 // itemsize)                       # 8 f32 / 16 bf16 / 32 int8
    cap = max(sub, (_TILE_BYTES // (_LANE * itemsize)) // sub * sub)
    half = -(-rows // 2)                               # ceil(rows / 2)
    half = -(-half // sub) * sub                       # round up to sublane multiple
    return max(sub, min(cap, half))


@jax.jit
def _residual_add_pallas(y, x):
    """y + x on a lane-dense (rows, 128) slab with auto-pipelined BlockSpecs.
    Requires y.size % 128 == 0 (enforced by the dispatcher)."""
    orig_shape = y.shape
    rows = y.size // _LANE
    y2d = jnp.ravel(y).reshape(rows, _LANE)   # contiguous reshape: no extra HBM pass
    x2d = jnp.ravel(x).reshape(rows, _LANE)

    tr = _pick_tile_rows(rows, y.dtype.itemsize)
    grid = (pl.cdiv(rows, tr),)

    out2d = pl.pallas_call(
        _residual_kernel,
        out_shape=jax.ShapeDtypeStruct((rows, _LANE), y.dtype),
        grid=grid,
        in_specs=[
            pl.BlockSpec((tr, _LANE), lambda i: (i, 0)),   # y = fn(x)
            pl.BlockSpec((tr, _LANE), lambda i: (i, 0)),   # x (skip connection)
        ],
        out_specs=pl.BlockSpec((tr, _LANE), lambda i: (i, 0)),
        compiler_params=pltpu.CompilerParams(
            dimension_semantics=("parallel",)),
    )(y2d, x2d)
    return out2d.reshape(orig_shape)


def residual_add(y, x):
    """Residual-owned compute: y + x (y = fn(x)), dispatched to the Pallas
    kernel when it pays off, otherwise to the fused XLA add."""
    if x.dtype != y.dtype:
        x = x.astype(y.dtype)
    n = y.size
    nbytes = n * y.dtype.itemsize
    if nbytes < _BYPASS_BYTES or (n % _LANE) != 0:
        # Small tensors: fixed per-call/grid-step overhead dominates.
        # Ragged numel: fused XLA add is already the 3-pass minimum; any
        # pad/slice repack around the kernel only adds full extra HBM passes.
        return y + x
    return _residual_add_pallas(y, x)


class ResidualPallas:
    """JAX/Pallas equivalent of the PyTorch Residual module: fn(x) + x.

    With fuse_with_xla=True the add is left entirely to XLA so it fuses into
    fn's epilogue (best when fn is plain XLA). The default keeps the Pallas
    add, for the case where y = fn(x) is already materialized in HBM by a
    Pallas / custom-call producer.
    """

    def __init__(self, fn, fuse_with_xla=False):
        self.fn = fn
        self.fuse_with_xla = fuse_with_xla

    def __call__(self, x):
        y = self.fn(x)                     # arbitrary wrapped module: plain JAX glue
        if self.fuse_with_xla:
            return y + x.astype(y.dtype)
        return residual_add(y, x)          # Residual-owned compute: Pallas kernel


if __name__ == "__main__":
    key = jax.random.PRNGKey(0)
    fn = jax.nn.gelu                       # example wrapped fn (arbitrary)
    mod = ResidualPallas(fn)

    # 1) Small NCHW generator feature map -> small-tensor bypass (fused XLA add).
    x_small = jax.random.normal(key, (2, 4, 16, 16), dtype=jnp.float32)
    out_small = mod(x_small)
    jax.block_until_ready(out_small)
    ref_small = fn(x_small) + x_small
    assert out_small.shape == x_small.shape and out_small.dtype == x_small.dtype
    assert jnp.allclose(out_small, ref_small, atol=1e-6, rtol=1e-6)

    # 2) Medium f32 feature map -> Pallas path (rows=1024, tile=512 rows, grid=(2,)).
    x_f32 = jax.random.normal(key, (2, 16, 64, 64), dtype=jnp.float32)
    out_f32 = mod(x_f32)
    jax.block_until_ready(out_f32)
    ref_f32 = fn(x_f32) + x_f32
    assert out_f32.shape == x_f32.shape and out_f32.dtype == x_f32.dtype
    assert jnp.allclose(out_f32, ref_f32, atol=1e-6, rtol=1e-6)

    # 3) bf16 native dtype end-to-end through the Pallas path.
    x_bf16 = x_f32.astype(jnp.bfloat16)
    out_bf16 = mod(x_bf16)
    jax.block_until_ready(out_bf16)
    ref_bf16 = fn(x_bf16) + x_bf16
    assert out_bf16.dtype == jnp.bfloat16
    assert jnp.allclose(out_bf16.astype(jnp.float32), ref_bf16.astype(jnp.float32),
                        atol=1e-2, rtol=1e-2)

    # 4) Ragged numel (not a multiple of 128), above the bypass threshold:
    #    dispatched to the fused XLA add (cheapest possible for the ragged case).
    x_rag = jax.random.normal(key, (2, 17, 31, 63), dtype=jnp.float32)
    out_rag = mod(x_rag)
    jax.block_until_ready(out_rag)
    ref_rag = fn(x_rag) + x_rag
    assert out_rag.shape == x_rag.shape
    assert jnp.allclose(out_rag, ref_rag, atol=1e-6, rtol=1e-6)

    print("KERNEL_OK")
</pallas_src>

<mosaic_0001>
module attributes {stable_mosaic.version = 11 : i64} {
  func.func @_residual_kernel(%arg0: i32, %arg1: memref<512x128xf32, #tpu.memory_space<vmem>>, %arg2: memref<512x128xf32, #tpu.memory_space<vmem>>, %arg3: memref<512x128xf32, #tpu.memory_space<vmem>>) attributes {dimension_semantics = [#tpu.dimension_semantics<parallel>], iteration_bounds = array<i64: 2>, scalar_prefetch = 0 : i64, scratch_operands = 0 : i64, tpu.core_type = #tpu.core_type<tc>, window_params = [{transform_indices = @transform_0, window_bounds = array<i64: 512, 128>}, {transform_indices = @transform_1, window_bounds = array<i64: 512, 128>}, {transform_indices = @transform_2, window_bounds = array<i64: 512, 128>}]} {
    %c0 = arith.constant 0 : index
    %c0_0 = arith.constant 0 : index
    %0 = vector.load %arg1[%c0, %c0_0] : memref<512x128xf32, #tpu.memory_space<vmem>>, vector<512x128xf32>
    %c0_1 = arith.constant 0 : index
    %c0_2 = arith.constant 0 : index
    %1 = vector.load %arg2[%c0_1, %c0_2] : memref<512x128xf32, #tpu.memory_space<vmem>>, vector<512x128xf32>
    %2 = arith.addf %0, %1 : vector<512x128xf32>
    %c0_3 = arith.constant 0 : index
    %c0_4 = arith.constant 0 : index
    %3 = vector.load %arg3[%c0_3, %c0_4] : memref<512x128xf32, #tpu.memory_space<vmem>>, vector<512x128xf32>
    tpu.vector_store %arg3[%c0_3, %c0_4], %2 {strides = array<i32>} : memref<512x128xf32, #tpu.memory_space<vmem>>, vector<512x128xf32>,
    return
  }
  func.func @transform_0(%arg0: i32) -> (i32, i32) {
    %c0_i32 = arith.constant 0 : i32
    %c0_i32_0 = arith.constant 0 : i32
    return %arg0, %c0_i32 : i32, i32
  }
  func.func @transform_1(%arg0: i32) -> (i32, i32) {
    %c0_i32 = arith.constant 0 : i32
    %c0_i32_0 = arith.constant 0 : i32
    return %arg0, %c0_i32 : i32, i32
  }
  func.func @transform_2(%arg0: i32) -> (i32, i32) {
    %c0_i32 = arith.constant 0 : i32
    %c0_i32_0 = arith.constant 0 : i32
    return %arg0, %c0_i32 : i32, i32
  }
}

</mosaic_0001>

<llo_original>
// kernel: _residual_add_pallas.1
$region0: #{_residual_add_pallas.1}
  #allocation0 [shape = 'u32[]', space=smem, size = 0x4, offset = 0x4, fixed_abs, tag = 'smem constant byte address 0x4 - core index']
  #allocation1 [shape = 'u32[144,128]{1,0:T(1,128)}', space=vmem, size = 0x12000, scoped, tag = 'internal scratch']
  %s0 = inlined_call_operand.vmem [shape: f32[1024,128], index: 0, kind: input, shape index: {}]
  %s1 = inlined_call_operand.vmem [shape: f32[1024,128], index: 1, kind: input, shape index: {}]
  %s2 = inlined_call_operand.vmem [shape: f32[1024,128], index: 2, kind: output, shape index: {}]
  %s3 = sld [smem:[#allocation0]]
  $region41: #{_residual_add_pallas.1} parent=0
    _
  %s5 = ssub.s32 1, %s3
  %s6 = scalar_select 0, %s5, %s3
  loop: start=0, step=1, limit=4
  $region2: #{_residual_add_pallas.1} parent=0 // loop_pre_header
    _
  $region3: #{_residual_add_pallas.1} parent=0 // loop_header
    %s8 = sphi 0, %s12
    %p9 = scmp.ge.s32.totalorder %s8, 4
    %s18 = sphi 0, %s20
    %s21 = sphi 0, %s18
    %s22 = sphi 0, %s21
    %s38 = sphi 0, %s22
    %s44 = sphi 0, %s46
    %s47 = sphi 0, %s44
    %s48 = sphi 0, %s47
    %s64 = sphi 0, %s48
    %s70 = sphi 0, %s72
    %s73 = sphi 0, %s70
    %s74 = sphi 0, %s73
    %s90 = sphi 0, %s74
  $region4: #{_residual_add_pallas.1} parent=0 // loop_header_branch
    %11 = sbr.rel (%p9) target = $region8
  $region5: #{_residual_add_pallas.1} parent=0 // loop_body
    %s13 = ssub.s32 %s8, 1
    %s14 = ssub.s32 %s8, 2
    %s15 = sadd.s32 %s8, 1
    %s16 = ssub.s32 %s8, %s15
    %p17 = scmp.eq.s32.totalorder %s16, 0
    %s19 = sadd.s32 %s18, 1
    %s20 = scalar_select %p17, %s18, %s19
    %p23 = pneg %p17
    %p24 = scmp.eq.s32.totalorder %s8, 1
    %p25 = por %p23, %p24
    %p26 = scmp.ne.s32.totalorder %s18, %s21
    %p27 = scmp.eq.s32.totalorder %s8, 0
    %p28 = por %p26, %p27
    %p29 = scmp.ne.s32.totalorder %s18, %s21
    %p30 = scmp.eq.s32.totalorder %s13, 1
    %p31 = por %p29, %p30
    %p32 = scmp.ne.s32.totalorder %s21, %s22
    %p33 = scmp.eq.s32.totalorder %s13, 0
    %p34 = por %p32, %p33
    %p35 = scmp.ne.s32.totalorder %s21, %s22
    %p36 = scmp.eq.s32.totalorder %s14, 1
    %p37 = por %p35, %p36
    %p39 = scmp.ne.s32.totalorder %s22, %s38
    %p40 = scmp.eq.s32.totalorder %s14, 0
    %p41 = por %p39, %p40
    %s42 = ssub.s32 %s8, %s15
    %p43 = scmp.eq.s32.totalorder %s42, 0
    %s45 = sadd.s32 %s44, 1
    %s46 = scalar_select %p43, %s44, %s45
    %p49 = pneg %p43
    %p50 = scmp.eq.s32.totalorder %s8, 1
    %p51 = por %p49, %p50
    %p52 = scmp.ne.s32.totalorder %s44, %s47
    %p53 = scmp.eq.s32.totalorder %s8, 0
    %p54 = por %p52, %p53
    %p55 = scmp.ne.s32.totalorder %s44, %s47
    %p56 = scmp.eq.s32.totalorder %s13, 1
    %p57 = por %p55, %p56
    %p58 = scmp.ne.s32.totalorder %s47, %s48
    %p59 = scmp.eq.s32.totalorder %s13, 0
    %p60 = por %p58, %p59
    %p61 = scmp.ne.s32.totalorder %s47, %s48
    %p62 = scmp.eq.s32.totalorder %s14, 1
    %p63 = por %p61, %p62
    %p65 = scmp.ne.s32.totalorder %s48, %s64
    %p66 = scmp.eq.s32.totalorder %s14, 0
    %p67 = por %p65, %p66
    %s68 = ssub.s32 %s8, %s15
    %p69 = scmp.eq.s32.totalorder %s68, 0
    %s71 = sadd.s32 %s70, 1
    %s72 = scalar_select %p69, %s70, %s71
    %p75 = pneg %p69
    %p76 = scmp.eq.s32.totalorder %s8, 1
    %p77 = por %p75, %p76
    %p78 = scmp.ne.s32.totalorder %s70, %s73
    %p79 = scmp.eq.s32.totalorder %s8, 0
    %p80 = por %p78, %p79
    %p81 = scmp.ne.s32.totalorder %s70, %s73
    %p82 = scmp.eq.s32.totalorder %s13, 1
    %p83 = por %p81, %p82
    %p84 = scmp.ne.s32.totalorder %s73, %s74
    %p85 = scmp.eq.s32.totalorder %s13, 0
    %p86 = por %p84, %p85
    %p87 = scmp.ne.s32.totalorder %s73, %s74
    %p88 = scmp.eq.s32.totalorder %s14, 1
    %p89 = por %p87, %p88
    %p91 = scmp.ne.s32.totalorder %s74, %s90
    %p92 = scmp.eq.s32.totalorder %s14, 0
    %p93 = por %p91, %p92
    %p94 = scmp.le.s32.totalorder 1, %s8
    %p95 = scmp.lt.s32.totalorder %s8, 3
    %p96 = pnand %p94, %p95
    %p97 = pneg %p96
    // Predicated region
    $region9: #{_residual_add_pallas.1} parent=5 // pred_check
      _
    $region10: #{_residual_add_pallas.1} parent=5 // pred_check_branch
      %99 = sbr.rel (%p96) target = $region12
    $region11: #{_residual_add_pallas.1} parent=5 // pred_region
      %s100 = ssub.s32 %s8, 1
    $region12: #{_residual_add_pallas.1} parent=5 // pred_fallthru
      _
    %p101 = scmp.lt.s32.totalorder %s8, 2
    // Predicated region
    $region13: #{_residual_add_pallas.1} parent=5 // pred_check
      %p102 = pneg %p101
    $region14: #{_residual_add_pallas.1} parent=5 // pred_check_branch
      %104 = sbr.rel (%p102) target = $region16
    $region15: #{_residual_add_pallas.1} parent=5 // pred_region
      // Predicated region
      $region17: #{_residual_add_pallas.1} parent=15 // pred_check
        %p105 = pneg %p28
      $region18: #{_residual_add_pallas.1} parent=15 // pred_check_branch
        %107 = sbr.rel (%p105) target = $region20
      $region19: #{_residual_add_pallas.1} parent=15 // pred_region
        %s108 = smul.u32 64, %s8
        %p109 = scmp.lt.s32.totalorder %s108, 127
        %s110 = scalar_select %p109, %s108, 127
        %s111 = smul.addr %s110, 8
        %s112 = scalar_lea.vmem %s0, %s111
        %s113 = smul.u32 64, %s8
      $region20: #{_residual_add_pallas.1} parent=15 // pred_fallthru
        _
      // Predicated region
      $region21: #{_residual_add_pallas.1} parent=15 // pred_check
        %p114 = pneg %p54
      $region22: #{_residual_add_pallas.1} parent=15 // pred_check_branch
        %116 = sbr.rel (%p114) target = $region24
      $region23: #{_residual_add_pallas.1} parent=15 // pred_region
        %s117 = smul.u32 64, %s8
        %p118 = scmp.lt.s32.totalorder %s117, 127
        %s119 = scalar_select %p118, %s117, 127
        %s120 = smul.addr %s119, 8
        %s121 = scalar_lea.vmem %s1, %s120
        %s122 = smul.u32 64, %s8
      $region24: #{_residual_add_pallas.1} parent=15 // pred_fallthru
        _
    $region16: #{_residual_add_pallas.1} parent=5 // pred_fallthru
      _
    %p123 = scmp.le.s32.totalorder 1, %s8
    %p124 = scmp.lt.s32.totalorder %s8, 3
    %p125 = pnand %p123, %p124
    %p126 = pneg %p125
    // Predicated region
    $region25: #{_residual_add_pallas.1} parent=5 // pred_check
      _
    $region26: #{_residual_add_pallas.1} parent=5 // pred_check_branch
      %128 = sbr.rel (%p125) target = $region28
    $region27: #{_residual_add_pallas.1} parent=5 // pred_region
      %s129 = ssub.s32 %s8, 1
      %s130 = smul.u32 64, %s13
      %p131 = scmp.lt.s32.totalorder %s130, 127
      %s132 = scalar_select %p131, %s130, 127
      %s133 = smul.addr %s132, 8
      %s134 = scalar_lea.vmem %s0, %s133
      %p135 = pneg %p34
      %p136 = pneg %p31
      %s137 = smul.u32 64, %s13
      %p138 = scmp.lt.s32.totalorder %s137, 127
      %s139 = scalar_select %p138, %s137, 127
      %s140 = smul.addr %s139, 8
      %s141 = scalar_lea.vmem %s1, %s140
      %p142 = pneg %p60
      %p143 = pneg %p57
      %p144 = pneg %p86
      %p145 = pneg %p83
      %s146 = smul.u32 64, %s13
      %p147 = scmp.lt.s32.totalorder %s146, 127
      %s148 = scalar_select %p147, %s146, 127
      %s149 = smul.addr %s148, 8
      %s150 = scalar_lea.vmem %s2, %s149
      %s151 = smul.u32 64, %s13
      %p152 = scmp.lt.s32.totalorder %s151, 127
      %s153 = scalar_select %p152, %s151, 127
      %s154 = smul.addr %s153, 8
      %s155 = scalar_lea.vmem %s0, %s154
      %s156 = smul.u32 64, %s13
      %s157 = smul.u32 64, %s13
      %p158 = scmp.lt.s32.totalorder %s157, 127
      %s159 = scalar_select %p158, %s157, 127
      %s160 = smul.addr %s159, 8
      %s161 = scalar_lea.vmem %s1, %s160
      %s162 = smul.u32 64, %s13
      %s163 = smul.u32 64, %s13
      %p164 = scmp.lt.s32.totalorder %s163, 127
      %s165 = scalar_select %p164, %s163, 127
      %s166 = smul.addr %s165, 8
      %s167 = scalar_lea.vmem %s2, %s166
      %s168 = smul.u32 64, %s13
      %v169 = vld [vmem:[%s155] sm:$0xff]
      %v170 = vld [vmem:[%s155 + $0x8] sm:$0xff]
      %v171 = vld [vmem:[%s155 + $0x10] sm:$0xff]
      %v172 = vld [vmem:[%s155 + $0x18] sm:$0xff]
      %v173 = vld [vmem:[%s155 + $0x20] sm:$0xff]
      %v174 = vld [vmem:[%s155 + $0x28] sm:$0xff]
      %v175 = vld [vmem:[%s155 + $0x30] sm:$0xff]
      %v176 = vld [vmem:[%s155 + $0x38] sm:$0xff]
      %v177 = vld [vmem:[%s155 + $0x40] sm:$0xff]
      %v178 = vld [vmem:[%s155 + $0x48] sm:$0xff]
      %v179 = vld [vmem:[%s155 + $0x50] sm:$0xff]
      %v180 = vld [vmem:[%s155 + $0x58] sm:$0xff]
      %v181 = vld [vmem:[%s155 + $0x60] sm:$0xff]
      %v182 = vld [vmem:[%s155 + $0x68] sm:$0xff]
      %v183 = vld [vmem:[%s155 + $0x70] sm:$0xff]
      %v184 = vld [vmem:[%s155 + $0x78] sm:$0xff]
      %v185 = vld [vmem:[%s155 + $0x80] sm:$0xff]
      %v186 = vld [vmem:[%s155 + $0x88] sm:$0xff]
      %v187 = vld [vmem:[%s155 + $0x90] sm:$0xff]
      %v188 = vld [vmem:[%s155 + $0x98] sm:$0xff]
      %v189 = vld [vmem:[%s155 + $0xa0] sm:$0xff]
      %v190 = vld [vmem:[%s155 + $0xa8] sm:$0xff]
      %v191 = vld [vmem:[%s155 + $0xb0] sm:$0xff]
      %v192 = vld [vmem:[%s155 + $0xb8] sm:$0xff]
      %v193 = vld [vmem:[%s155 + $0xc0] sm:$0xff]
      %v194 = vld [vmem:[%s155 + $0xc8] sm:$0xff]
      %v195 = vld [vmem:[%s155 + $0xd0] sm:$0xff]
      %v196 = vld [vmem:[%s155 + $0xd8] sm:$0xff]
      %v197 = vld [vmem:[%s155 + $0xe0] sm:$0xff]
      %v198 = vld [vmem:[%s155 + $0xe8] sm:$0xff]
      %v199 = vld [vmem:[%s155 + $0xf0] sm:$0xff]
      %v200 = vld [vmem:[%s155 + $0xf8] sm:$0xff]
      %v201 = vld [vmem:[%s155 + $0x100] sm:$0xff]
      %v202 = vld [vmem:[%s155 + $0x108] sm:$0xff]
      %v203 = vld [vmem:[%s155 + $0x110] sm:$0xff]
      %v204 = vld [vmem:[%s155 + $0x118] sm:$0xff]
      %v205 = vld [vmem:[%s155 + $0x120] sm:$0xff]
      %v206 = vld [vmem:[%s155 + $0x128] sm:$0xff]
      %v207 = vld [vmem:[%s155 + $0x130] sm:$0xff]
      %v208 = vld [vmem:[%s155 + $0x138] sm:$0xff]
      %v209 = vld [vmem:[%s155 + $0x140] sm:$0xff]
      %v210 = vld [vmem:[%s155 + $0x148] sm:$0xff]
      %v211 = vld [vmem:[%s155 + $0x150] sm:$0xff]
      %v212 = vld [vmem:[%s155 + $0x158] sm:$0xff]
      %v213 = vld [vmem:[%s155 + $0x160] sm:$0xff]
      %v214 = vld [vmem:[%s155 + $0x168] sm:$0xff]
      %v215 = vld [vmem:[%s155 + $0x170] sm:$0xff]
      %v216 = vld [vmem:[%s155 + $0x178] sm:$0xff]
      %v217 = vld [vmem:[%s155 + $0x180] sm:$0xff]
      %v218 = vld [vmem:[%s155 + $0x188] sm:$0xff]
      %v219 = vld [vmem:[%s155 + $0x190] sm:$0xff]
      %v220 = vld [vmem:[%s155 + $0x198] sm:$0xff]
      %v221 = vld [vmem:[%s155 + $0x1a0] sm:$0xff]
      %v222 = vld [vmem:[%s155 + $0x1a8] sm:$0xff]
      %v223 = vld [vmem:[%s155 + $0x1b0] sm:$0xff]
      %v224 = vld [vmem:[%s155 + $0x1b8] sm:$0xff]
      %v225 = vld [vmem:[%s155 + $0x1c0] sm:$0xff]
      %v226 = vld [vmem:[%s155 + $0x1c8] sm:$0xff]
      %v227 = vld [vmem:[%s155 + $0x1d0] sm:$0xff]
      %v228 = vld [vmem:[%s155 + $0x1d8] sm:$0xff]
      %v229 = vld [vmem:[%s155 + $0x1e0] sm:$0xff]
      %v230 = vld [vmem:[%s155 + $0x1e8] sm:$0xff]
      %v231 = vld [vmem:[%s155 + $0x1f0] sm:$0xff]
      %v232 = vld [vmem:[%s155 + $0x1f8] sm:$0xff]
      %v233 = vld [vmem:[%s161] sm:$0xff]
      %v234 = vld [vmem:[%s161 + $0x8] sm:$0xff]
      %v235 = vld [vmem:[%s161 + $0x10] sm:$0xff]
      %v236 = vld [vmem:[%s161 + $0x18] sm:$0xff]
      %v237 = vld [vmem:[%s161 + $0x20] sm:$0xff]
      %v238 = vld [vmem:[%s161 + $0x28] sm:$0xff]
      %v239 = vld [vmem:[%s161 + $0x30] sm:$0xff]
      %v240 = vld [vmem:[%s161 + $0x38] sm:$0xff]
      %v241 = vld [vmem:[%s161 + $0x40] sm:$0xff]
      %v242 = vld [vmem:[%s161 + $0x48] sm:$0xff]
      %v243 = vld [vmem:[%s161 + $0x50] sm:$0xff]
      %v244 = vld [vmem:[%s161 + $0x58] sm:$0xff]
      %v245 = vld [vmem:[%s161 + $0x60] sm:$0xff]
      %v246 = vld [vmem:[%s161 + $0x68] sm:$0xff]
      %v247 = vld [vmem:[%s161 + $0x70] sm:$0xff]
      %v248 = vld [vmem:[%s161 + $0x78] sm:$0xff]
      %v249 = vld [vmem:[%s161 + $0x80] sm:$0xff]
      %v250 = vld [vmem:[%s161 + $0x88] sm:$0xff]
      %v251 = vld [vmem:[%s161 + $0x90] sm:$0xff]
      %v252 = vld [vmem:[%s161 + $0x98] sm:$0xff]
      %v253 = vld [vmem:[%s161 + $0xa0] sm:$0xff]
      %v254 = vld [vmem:[%s161 + $0xa8] sm:$0xff]
      %v255 = vld [vmem:[%s161 + $0xb0] sm:$0xff]
      %v256 = vld [vmem:[%s161 + $0xb8] sm:$0xff]
      %v257 = vld [vmem:[%s161 + $0xc0] sm:$0xff]
      %v258 = vld [vmem:[%s161 + $0xc8] sm:$0xff]
      %v259 = vld [vmem:[%s161 + $0xd0] sm:$0xff]
      %v260 = vld [vmem:[%s161 + $0xd8] sm:$0xff]
      %v261 = vld [vmem:[%s161 + $0xe0] sm:$0xff]
      %v262 = vld [vmem:[%s161 + $0xe8] sm:$0xff]
      %v263 = vld [vmem:[%s161 + $0xf0] sm:$0xff]
      %v264 = vld [vmem:[%s161 + $0xf8] sm:$0xff]
      %v265 = vld [vmem:[%s161 + $0x100] sm:$0xff]
      %v266 = vld [vmem:[%s161 + $0x108] sm:$0xff]
      %v267 = vld [vmem:[%s161 + $0x110] sm:$0xff]
      %v268 = vld [vmem:[%s161 + $0x118] sm:$0xff]
      %v269 = vld [vmem:[%s161 + $0x120] sm:$0xff]
      %v270 = vld [vmem:[%s161 + $0x128] sm:$0xff]
      %v271 = vld [vmem:[%s161 + $0x130] sm:$0xff]
      %v272 = vld [vmem:[%s161 + $0x138] sm:$0xff]
      %v273 = vld [vmem:[%s161 + $0x140] sm:$0xff]
      %v274 = vld [vmem:[%s161 + $0x148] sm:$0xff]
      %v275 = vld [vmem:[%s161 + $0x150] sm:$0xff]
      %v276 = vld [vmem:[%s161 + $0x158] sm:$0xff]
      %v277 = vld [vmem:[%s161 + $0x160] sm:$0xff]
      %v278 = vld [vmem:[%s161 + $0x168] sm:$0xff]
      %v279 = vld [vmem:[%s161 + $0x170] sm:$0xff]
      %v280 = vld [vmem:[%s161 + $0x178] sm:$0xff]
      %v281 = vld [vmem:[%s161 + $0x180] sm:$0xff]
      %v282 = vld [vmem:[%s161 + $0x188] sm:$0xff]
      %v283 = vld [vmem:[%s161 + $0x190] sm:$0xff]
      %v284 = vld [vmem:[%s161 + $0x198] sm:$0xff]
      %v285 = vld [vmem:[%s161 + $0x1a0] sm:$0xff]
      %v286 = vld [vmem:[%s161 + $0x1a8] sm:$0xff]
      %v287 = vld [vmem:[%s161 + $0x1b0] sm:$0xff]
      %v288 = vld [vmem:[%s161 + $0x1b8] sm:$0xff]
      %v289 = vld [vmem:[%s161 + $0x1c0] sm:$0xff]
      %v290 = vld [vmem:[%s161 + $0x1c8] sm:$0xff]
      %v291 = vld [vmem:[%s161 + $0x1d0] sm:$0xff]
      %v292 = vld [vmem:[%s161 + $0x1d8] sm:$0xff]
      %v293 = vld [vmem:[%s161 + $0x1e0] sm:$0xff]
      %v294 = vld [vmem:[%s161 + $0x1e8] sm:$0xff]
      %v295 = vld [vmem:[%s161 + $0x1f0] sm:$0xff]
      %v296 = vld [vmem:[%s161 + $0x1f8] sm:$0xff]
      %v297 = vadd.f32 %v169, %v233
      %v298 = vadd.f32 %v170, %v234
      %v299 = vadd.f32 %v171, %v235
      %v300 = vadd.f32 %v172, %v236
      %v301 = vadd.f32 %v173, %v237
      %v302 = vadd.f32 %v174, %v238
      %v303 = vadd.f32 %v175, %v239
      %v304 = vadd.f32 %v176, %v240
      %v305 = vadd.f32 %v177, %v241
      %v306 = vadd.f32 %v178, %v242
      %v307 = vadd.f32 %v179, %v243
      %v308 = vadd.f32 %v180, %v244
      %v309 = vadd.f32 %v181, %v245
      %v310 = vadd.f32 %v182, %v246
      %v311 = vadd.f32 %v183, %v247
      %v312 = vadd.f32 %v184, %v248
      %v313 = vadd.f32 %v185, %v249
      %v314 = vadd.f32 %v186, %v250
      %v315 = vadd.f32 %v187, %v251
      %v316 = vadd.f32 %v188, %v252
      %v317 = vadd.f32 %v189, %v253
      %v318 = vadd.f32 %v190, %v254
      %v319 = vadd.f32 %v191, %v255
      %v320 = vadd.f32 %v192, %v256
      %v321 = vadd.f32 %v193, %v257
      %v322 = vadd.f32 %v194, %v258
      %v323 = vadd.f32 %v195, %v259
      %v324 = vadd.f32 %v196, %v260
      %v325 = vadd.f32 %v197, %v261
      %v326 = vadd.f32 %v198, %v262
      %v327 = vadd.f32 %v199, %v263
      %v328 = vadd.f32 %v200, %v264
      %v329 = vadd.f32 %v201, %v265
      %v330 = vadd.f32 %v202, %v266
      %v331 = vadd.f32 %v203, %v267
      %v332 = vadd.f32 %v204, %v268
      %v333 = vadd.f32 %v205, %v269
      %v334 = vadd.f32 %v206, %v270
      %v335 = vadd.f32 %v207, %v271
      %v336 = vadd.f32 %v208, %v272
      %v337 = vadd.f32 %v209, %v273
      %v338 = vadd.f32 %v210, %v274
      %v339 = vadd.f32 %v211, %v275
      %v340 = vadd.f32 %v212, %v276
      %v341 = vadd.f32 %v213, %v277
      %v342 = vadd.f32 %v214, %v278
      %v343 = vadd.f32 %v215, %v279
      %v344 = vadd.f32 %v216, %v280
      %v345 = vadd.f32 %v217, %v281
      %v346 = vadd.f32 %v218, %v282
      %v347 = vadd.f32 %v219, %v283
      %v348 = vadd.f32 %v220, %v284
      %v349 = vadd.f32 %v221, %v285
      %v350 = vadd.f32 %v222, %v286
      %v351 = vadd.f32 %v223, %v287
      %v352 = vadd.f32 %v224, %v288
      %v353 = vadd.f32 %v225, %v289
      %v354 = vadd.f32 %v226, %v290
      %v355 = vadd.f32 %v227, %v291
      %v356 = vadd.f32 %v228, %v292
      %v357 = vadd.f32 %v229, %v293
      %v358 = vadd.f32 %v230, %v294
      %v359 = vadd.f32 %v231, %v295
      %v360 = vadd.f32 %v232, %v296
      %361 = vst [vmem:[%s167] sm:$0xff] %v297
      %362 = vst [vmem:[%s167 + $0x8] sm:$0xff] %v298
      %363 = vst [vmem:[%s167 + $0x10] sm:$0xff] %v299
      %364 = vst [vmem:[%s167 + $0x18] sm:$0xff] %v300
      %365 = vst [vmem:[%s167 + $0x20] sm:$0xff] %v301
      %366 = vst [vmem:[%s167 + $0x28] sm:$0xff] %v302
      %367 = vst [vmem:[%s167 + $0x30] sm:$0xff] %v303
      %368 = vst [vmem:[%s167 + $0x38] sm:$0xff] %v304
      %369 = vst [vmem:[%s167 + $0x40] sm:$0xff] %v305
      %370 = vst [vmem:[%s167 + $0x48] sm:$0xff] %v306
      %371 = vst [vmem:[%s167 + $0x50] sm:$0xff] %v307
      %372 = vst [vmem:[%s167 + $0x58] sm:$0xff] %v308
      %373 = vst [vmem:[%s167 + $0x60] sm:$0xff] %v309
      %374 = vst [vmem:[%s167 + $0x68] sm:$0xff] %v310
      %375 = vst [vmem:[%s167 + $0x70] sm:$0xff] %v311
      %376 = vst [vmem:[%s167 + $0x78] sm:$0xff] %v312
      %377 = vst [vmem:[%s167 + $0x80] sm:$0xff] %v313
      %378 = vst [vmem:[%s167 + $0x88] sm:$0xff] %v314
      %379 = vst [vmem:[%s167 + $0x90] sm:$0xff] %v315
      %380 = vst [vmem:[%s167 + $0x98] sm:$0xff] %v316
      %381 = vst [vmem:[%s167 + $0xa0] sm:$0xff] %v317
      %382 = vst [vmem:[%s167 + $0xa8] sm:$0xff] %v318
      %383 = vst [vmem:[%s167 + $0xb0] sm:$0xff] %v319
      %384 = vst [vmem:[%s167 + $0xb8] sm:$0xff] %v320
      %385 = vst [vmem:[%s167 + $0xc0] sm:$0xff] %v321
      %386 = vst [vmem:[%s167 + $0xc8] sm:$0xff] %v322
      %387 = vst [vmem:[%s167 + $0xd0] sm:$0xff] %v323
      %388 = vst [vmem:[%s167 + $0xd8] sm:$0xff] %v324
      %389 = vst [vmem:[%s167 + $0xe0] sm:$0xff] %v325
      %390 = vst [vmem:[%s167 + $0xe8] sm:$0xff] %v326
      %391 = vst [vmem:[%s167 + $0xf0] sm:$0xff] %v327
      %392 = vst [vmem:[%s167 + $0xf8] sm:$0xff] %v328
      %393 = vst [vmem:[%s167 + $0x100] sm:$0xff] %v329
      %394 = vst [vmem:[%s167 + $0x108] sm:$0xff] %v330
      %395 = vst [vmem:[%s167 + $0x110] sm:$0xff] %v331
      %396 = vst [vmem:[%s167 + $0x118] sm:$0xff] %v332
      %397 = vst [vmem:[%s167 + $0x120] sm:$0xff] %v333
      %398 = vst [vmem:[%s167 + $0x128] sm:$0xff] %v334
      %399 = vst [vmem:[%s167 + $0x130] sm:$0xff] %v335
      %400 = vst [vmem:[%s167 + $0x138] sm:$0xff] %v336
      %401 = vst [vmem:[%s167 + $0x140] sm:$0xff] %v337
      %402 = vst [vmem:[%s167 + $0x148] sm:$0xff] %v338
      %403 = vst [vmem:[%s167 + $0x150] sm:$0xff] %v339
      %404 = vst [vmem:[%s167 + $0x158] sm:$0xff] %v340
      %405 = vst [vmem:[%s167 + $0x160] sm:$0xff] %v341
      %406 = vst [vmem:[%s167 + $0x168] sm:$0xff] %v342
      %407 = vst [vmem:[%s167 + $0x170] sm:$0xff] %v343
      %408 = vst [vmem:[%s167 + $0x178] sm:$0xff] %v344
      %409 = vst [vmem:[%s167 + $0x180] sm:$0xff] %v345
      %410 = vst [vmem:[%s167 + $0x188] sm:$0xff] %v346
      %411 = vst [vmem:[%s167 + $0x190] sm:$0xff] %v347
      %412 = vst [vmem:[%s167 + $0x198] sm:$0xff] %v348
      %413 = vst [vmem:[%s167 + $0x1a0] sm:$0xff] %v349
      %414 = vst [vmem:[%s167 + $0x1a8] sm:$0xff] %v350
      %415 = vst [vmem:[%s167 + $0x1b0] sm:$0xff] %v351
      %416 = vst [vmem:[%s167 + $0x1b8] sm:$0xff] %v352
      %417 = vst [vmem:[%s167 + $0x1c0] sm:$0xff] %v353
      %418 = vst [vmem:[%s167 + $0x1c8] sm:$0xff] %v354
      %419 = vst [vmem:[%s167 + $0x1d0] sm:$0xff] %v355
      %420 = vst [vmem:[%s167 + $0x1d8] sm:$0xff] %v356
      %421 = vst [vmem:[%s167 + $0x1e0] sm:$0xff] %v357
      %422 = vst [vmem:[%s167 + $0x1e8] sm:$0xff] %v358
      %423 = vst [vmem:[%s167 + $0x1f0] sm:$0xff] %v359
      %424 = vst [vmem:[%s167 + $0x1f8] sm:$0xff] %v360
      %s425 = smul.u32 64, %s13
      %p426 = scmp.lt.s32.totalorder %s425, 127
      %s427 = scalar_select %p426, %s425, 127
      %s428 = smul.addr %s427, 8
      %s429 = scalar_lea.vmem %s2, %s428
      // Predicated region
      $region29: #{_residual_add_pallas.1} parent=27 // pred_check
        %p430 = pneg %p83
      $region30: #{_residual_add_pallas.1} parent=27 // pred_check_branch
        %432 = sbr.rel (%p430) target = $region32
      $region31: #{_residual_add_pallas.1} parent=27 // pred_region
        %s433 = smul.u32 64, %s13
      $region32: #{_residual_add_pallas.1} parent=27 // pred_fallthru
        _
    $region28: #{_residual_add_pallas.1} parent=5 // pred_fallthru
      _
    %p434 = scmp.le.s32.totalorder 2, %s8
    // Predicated region
    $region33: #{_residual_add_pallas.1} parent=5 // pred_check
      %p435 = pneg %p434
    $region34: #{_residual_add_pallas.1} parent=5 // pred_check_branch
      %437 = sbr.rel (%p435) target = $region36
    $region35: #{_residual_add_pallas.1} parent=5 // pred_region
      %s438 = ssub.s32 %s8, 2
      // Predicated region
      $region37: #{_residual_add_pallas.1} parent=35 // pred_check
        %p439 = pneg %p89
      $region38: #{_residual_add_pallas.1} parent=35 // pred_check_branch
        %441 = sbr.rel (%p439) target = $region40
      $region39: #{_residual_add_pallas.1} parent=35 // pred_region
        %s442 = smul.u32 64, %s14
        %p443 = scmp.lt.s32.totalorder %s442, 127
        %s444 = scalar_select %p443, %s442, 127
        %s445 = smul.addr %s444, 8
        %s446 = scalar_lea.vmem %s2, %s445
      $region40: #{_residual_add_pallas.1} parent=35 // pred_fallthru
        _
    $region36: #{_residual_add_pallas.1} parent=5 // pred_fallthru
      _
  $region6: #{_residual_add_pallas.1} parent=0 // loop_footer
    %s12 = sadd.s32 1, %s8
  $region7: #{_residual_add_pallas.1} parent=0 // loop_footer_branch
    %7 = sbr.rel target = $region3
  $region8: #{_residual_add_pallas.1} parent=0 // loop_exit
    _

</llo_original>
